<compile_context>
chip_gen: v5e
topology: v5e:2x2
jax: 0.10.0
libtpu: 0.0.40
codegen_flags: <defaults>
</compile_context>

<pallas_src>
import jax
import jax.numpy as jnp
from jax.experimental import pallas as pl
from jax.experimental.pallas import tpu as pltpu

N_STATES = 4      # CartPole-v0 observation_space.shape[0]
N_ACTIONS = 2     # CartPole-v0 action_space.n
HIDDEN = 50

# Padded sizes used only inside the kernel / prepared params.
HIDDEN_PAD = 64   # 50 -> 64 (aligned contraction dim for the fc2 matmul)
OUT_PAD = 8       # 2  -> 8  (sublane-aligned output rows; 32 B/col writeback)


def _mlp_kernel(xt_ref, w1t_ref, b1t_ref, w2t_ref, b2t_ref, ot_ref):
    # One (N_STATES, tb) tile of transposed states -> (OUT_PAD, tb) Q-values.
    xt = xt_ref[...]                                      # (4, tb) f32

    # fc1 as K=4 unrolled broadcast-FMAs on the VPU; bias folded into term 0.
    # hT[:, j] = W1^T @ x_j + b1  for every batch column j in the tile.
    h = w1t_ref[:, 0:1] * xt[0:1, :] + b1t_ref[...]       # (64, tb)
    for k in range(1, N_STATES):                          # static unroll (3)
        h = h + w1t_ref[:, k:k + 1] * xt[k:k + 1, :]
    h = jnp.maximum(h, 0.0)                               # ReLU

    # fc2 on the MXU: (8, 64) @ (64, tb) -> (8, tb), f32 accumulation.
    ot_ref[...] = (
        jnp.dot(w2t_ref[...], h, preferred_element_type=jnp.float32)
        + b2t_ref[...]
    )


def prepare_params(w1, b1, w2, b2):
    """Pad + transpose parameters ONCE (hoisted out of the forward path).

    Inputs use the (in_features, out_features) layout:
      w1 (N_STATES, HIDDEN), b1 (HIDDEN,), w2 (HIDDEN, N_ACTIONS), b2 (N_ACTIONS,)
    Returns kernel-ready params:
      w1t (HIDDEN_PAD, N_STATES), b1t (HIDDEN_PAD, 1),
      w2t (OUT_PAD, HIDDEN_PAD),  b2t (OUT_PAD, 1)
    Zero padding is mathematically exact for this MLP.
    """
    w1t = jnp.pad(w1.T, ((0, HIDDEN_PAD - HIDDEN), (0, 0)))
    b1t = jnp.pad(b1.reshape(-1, 1), ((0, HIDDEN_PAD - HIDDEN), (0, 0)))
    w2t = jnp.pad(w2.T, ((0, OUT_PAD - N_ACTIONS), (0, HIDDEN_PAD - HIDDEN)))
    b2t = jnp.pad(b2.reshape(-1, 1), ((0, OUT_PAD - N_ACTIONS), (0, 0)))
    return w1t, b1t, w2t, b2t


def _pick_tile(B, block_b):
    """Pick the batch (lane) tile size and grid step count.

    * Whole batch in one block when it fits (tile == B exactly: no partial
      block, no padding; 'equal to full dim' satisfies the lane constraint).
    * Otherwise a multiple of 128 lanes, aiming for an even step count so the
      "parallel" batch axis splits evenly across v7x's two TensorCores.
    """
    if B <= block_b:
        return B, 1
    steps = pl.cdiv(B, block_b)
    if steps % 2 == 1:
        steps += 1
    tb = ((pl.cdiv(B, steps) + 127) // 128) * 128
    return tb, pl.cdiv(B, tb)


def net_forward(x, params, *, block_b=2048, min_pallas_batch=64):
    """Forward pass of Net: relu(x @ W1 + b1) @ W2 + b2.

    x:      (B, N_STATES) f32
    params: output of prepare_params() (pre-padded / pre-transposed).
    """
    w1t, b1t, w2t, b2t = params
    B = x.shape[0]

    # Small-batch fallback (choose_action path, B=2): pallas_call fixed
    # overhead dwarfs the ~600 FLOPs, so use a plain fused jnp expression.
    if B < min_pallas_batch:
        h = jnp.maximum(x @ w1t.T + b1t.T, 0.0)
        return (h @ w2t.T + b2t.T)[:, :N_ACTIONS]

    tb, steps = _pick_tile(B, block_b)
    xt = x.T                                  # (N_STATES, B): batch in lanes

    out_t = pl.pallas_call(
        _mlp_kernel,
        out_shape=jax.ShapeDtypeStruct((OUT_PAD, B), jnp.float32),
        grid_spec=pltpu.PrefetchScalarGridSpec(
            num_scalar_prefetch=0,
            grid=(steps,),
            in_specs=[
                # States: blocked along the batch (lane) axis.
                pl.BlockSpec((N_STATES, tb), lambda i: (0, i)),
                # Weights/biases map to block (0, 0) every step -> VMEM-resident.
                pl.BlockSpec((HIDDEN_PAD, N_STATES), lambda i: (0, 0)),
                pl.BlockSpec((HIDDEN_PAD, 1), lambda i: (0, 0)),
                pl.BlockSpec((OUT_PAD, HIDDEN_PAD), lambda i: (0, 0)),
                pl.BlockSpec((OUT_PAD, 1), lambda i: (0, 0)),
            ],
            out_specs=pl.BlockSpec((OUT_PAD, tb), lambda i: (0, i)),
        ),
        compiler_params=pltpu.CompilerParams(
            # Batch axis is independent -> shard across both TCs on v7x.
            dimension_semantics=("parallel",),
        ),
    )(xt, w1t, b1t, w2t, b2t)

    # Strip the padded output rows and return (B, N_ACTIONS).
    return out_t[:N_ACTIONS, :B].T


def init_params(key):
    # Mirrors Net.__init__: weights ~ N(0, 0.1); biases use PyTorch's default
    # Linear init U(-1/sqrt(fan_in), 1/sqrt(fan_in)).
    k1, k2, k3, k4 = jax.random.split(key, 4)
    w1 = 0.1 * jax.random.normal(k1, (N_STATES, HIDDEN), jnp.float32)
    b1 = jax.random.uniform(
        k2, (HIDDEN,), jnp.float32,
        minval=-1.0 / jnp.sqrt(N_STATES), maxval=1.0 / jnp.sqrt(N_STATES))
    w2 = 0.1 * jax.random.normal(k3, (HIDDEN, N_ACTIONS), jnp.float32)
    b2 = jax.random.uniform(
        k4, (N_ACTIONS,), jnp.float32,
        minval=-1.0 / jnp.sqrt(HIDDEN), maxval=1.0 / jnp.sqrt(HIDDEN))
    return w1, b1, w2, b2


def _reference(x, w1, b1, w2, b2):
    return jnp.maximum(x @ w1 + b1, 0.0) @ w2 + b2


if __name__ == "__main__":
    key = jax.random.PRNGKey(0)
    pkey, xkey, xkey2 = jax.random.split(key, 3)
    w1, b1, w2, b2 = init_params(pkey)
    params = prepare_params(w1, b1, w2, b2)   # pad/transpose once (hoisted)

    # 1) Inference-style batch (choose_action path): uses the jnp fallback.
    B = 2
    x = jax.random.normal(xkey, (B, N_STATES), jnp.float32)
    qv = net_forward(x, params)
    jax.block_until_ready(qv)
    ref = _reference(x, w1, b1, w2, b2)
    assert qv.shape == (B, N_ACTIONS)
    assert jnp.allclose(qv, ref, atol=1e-5), "mismatch (B=2, fallback)"

    # 2) Same tiny batch forced through the Pallas kernel (single grid step,
    #    tile == full batch, no padding).
    qv_k = net_forward(x, params, min_pallas_batch=0)
    jax.block_until_ready(qv_k)
    assert jnp.allclose(qv_k, ref, atol=1e-5), "mismatch (B=2, kernel)"

    # 3) Training-style batch, non-multiple tile -> multi-step grid with a
    #    partial edge block and the even-step balancing logic.
    B2 = 600
    x2 = jax.random.normal(xkey2, (B2, N_STATES), jnp.float32)
    qv2 = net_forward(x2, params, block_b=256, min_pallas_batch=0)
    jax.block_until_ready(qv2)
    ref2 = _reference(x2, w1, b1, w2, b2)
    assert qv2.shape == (B2, N_ACTIONS)
    assert jnp.allclose(qv2, ref2, atol=1e-5), "mismatch (B=600, kernel)"

    print("KERNEL_OK")
</pallas_src>

<mosaic_0001>
module attributes {stable_mosaic.version = 11 : i64} {
  func.func @_mlp_kernel(%arg0: i32, %arg1: memref<4x2xf32, #tpu.memory_space<vmem>>, %arg2: memref<64x4xf32, #tpu.memory_space<vmem>>, %arg3: memref<64x1xf32, #tpu.memory_space<vmem>>, %arg4: memref<8x64xf32, #tpu.memory_space<vmem>>, %arg5: memref<8x1xf32, #tpu.memory_space<vmem>>, %arg6: memref<8x2xf32, #tpu.memory_space<vmem>>) attributes {dimension_semantics = [#tpu.dimension_semantics<parallel>], iteration_bounds = array<i64: 1>, scalar_prefetch = 0 : i64, scratch_operands = 0 : i64, tpu.core_type = #tpu.core_type<tc>, window_params = [{transform_indices = @transform_0, window_bounds = array<i64: 4, 2>}, {pipeline_mode = #tpu.pipeline_mode<synchronous>, transform_indices = @transform_1, window_bounds = array<i64: 64, 4>}, {pipeline_mode = #tpu.pipeline_mode<synchronous>, transform_indices = @transform_2, window_bounds = array<i64: 64, 1>}, {pipeline_mode = #tpu.pipeline_mode<synchronous>, transform_indices = @transform_3, window_bounds = array<i64: 8, 64>}, {pipeline_mode = #tpu.pipeline_mode<synchronous>, transform_indices = @transform_4, window_bounds = array<i64: 8, 1>}, {transform_indices = @transform_5, window_bounds = array<i64: 8, 2>}]} {
    %c0 = arith.constant 0 : index
    %c0_0 = arith.constant 0 : index
    %0 = vector.load %arg1[%c0, %c0_0] : memref<4x2xf32, #tpu.memory_space<vmem>>, vector<4x2xf32>
    %c0_1 = arith.constant 0 : index
    %c0_2 = arith.constant 0 : index
    %1 = vector.load %arg2[%c0_1, %c0_2] : memref<64x4xf32, #tpu.memory_space<vmem>>, vector<64x1xf32>
    %2 = vector.extract_strided_slice %0 {offsets = [0, 0], sizes = [1, 2], strides = [1, 1]} : vector<4x2xf32> to vector<1x2xf32>
    %3 = vector.broadcast %1 : vector<64x1xf32> to vector<64x2xf32>
    %4 = vector.broadcast %2 : vector<1x2xf32> to vector<64x2xf32>
    %5 = arith.mulf %3, %4 : vector<64x2xf32>
    %c0_3 = arith.constant 0 : index
    %c0_4 = arith.constant 0 : index
    %6 = vector.load %arg3[%c0_3, %c0_4] : memref<64x1xf32, #tpu.memory_space<vmem>>, vector<64x1xf32>
    %7 = vector.broadcast %6 : vector<64x1xf32> to vector<64x2xf32>
    %8 = arith.addf %5, %7 : vector<64x2xf32>
    %c0_5 = arith.constant 0 : index
    %c1 = arith.constant 1 : index
    %9 = vector.load %arg2[%c0_5, %c1] : memref<64x4xf32, #tpu.memory_space<vmem>>, vector<64x1xf32>
    %10 = vector.extract_strided_slice %0 {offsets = [1, 0], sizes = [1, 2], strides = [1, 1]} : vector<4x2xf32> to vector<1x2xf32>
    %11 = vector.broadcast %9 : vector<64x1xf32> to vector<64x2xf32>
    %12 = vector.broadcast %10 : vector<1x2xf32> to vector<64x2xf32>
    %13 = arith.mulf %11, %12 : vector<64x2xf32>
    %14 = arith.addf %8, %13 : vector<64x2xf32>
    %c0_6 = arith.constant 0 : index
    %c2 = arith.constant 2 : index
    %15 = vector.load %arg2[%c0_6, %c2] : memref<64x4xf32, #tpu.memory_space<vmem>>, vector<64x1xf32>
    %16 = vector.extract_strided_slice %0 {offsets = [2, 0], sizes = [1, 2], strides = [1, 1]} : vector<4x2xf32> to vector<1x2xf32>
    %17 = vector.broadcast %15 : vector<64x1xf32> to vector<64x2xf32>
    %18 = vector.broadcast %16 : vector<1x2xf32> to vector<64x2xf32>
    %19 = arith.mulf %17, %18 : vector<64x2xf32>
    %20 = arith.addf %14, %19 : vector<64x2xf32>
    %c0_7 = arith.constant 0 : index
    %c3 = arith.constant 3 : index
    %21 = vector.load %arg2[%c0_7, %c3] : memref<64x4xf32, #tpu.memory_space<vmem>>, vector<64x1xf32>
    %22 = vector.extract_strided_slice %0 {offsets = [3, 0], sizes = [1, 2], strides = [1, 1]} : vector<4x2xf32> to vector<1x2xf32>
    %23 = vector.broadcast %21 : vector<64x1xf32> to vector<64x2xf32>
    %24 = vector.broadcast %22 : vector<1x2xf32> to vector<64x2xf32>
    %25 = arith.mulf %23, %24 : vector<64x2xf32>
    %26 = arith.addf %20, %25 : vector<64x2xf32>
    %cst = arith.constant 0.000000e+00 : f32
    %27 = vector.broadcast %cst : f32 to vector<64x2xf32>
    %28 = arith.maximumf %26, %27 : vector<64x2xf32>
    %c0_8 = arith.constant 0 : index
    %c0_9 = arith.constant 0 : index
    %29 = vector.load %arg4[%c0_8, %c0_9] : memref<8x64xf32, #tpu.memory_space<vmem>>, vector<8x64xf32>
    %cst_10 = arith.constant dense<0.000000e+00> : vector<8x2xf32>
    %30 = tpu.matmul %29, %28, %cst_10 {dimension_numbers = #tpu.dot_dimension_numbers<[1], [0], [0], [1], [0, 0, 1, 1], [], []>} : vector<8x64xf32>, vector<64x2xf32>, vector<8x2xf32> -> vector<8x2xf32>
    %c0_11 = arith.constant 0 : index
    %c0_12 = arith.constant 0 : index
    %31 = vector.load %arg5[%c0_11, %c0_12] : memref<8x1xf32, #tpu.memory_space<vmem>>, vector<8x1xf32>
    %32 = vector.broadcast %31 : vector<8x1xf32> to vector<8x2xf32>
    %33 = arith.addf %30, %32 : vector<8x2xf32>
    %c0_13 = arith.constant 0 : index
    %c0_14 = arith.constant 0 : index
    %34 = vector.load %arg6[%c0_13, %c0_14] : memref<8x2xf32, #tpu.memory_space<vmem>>, vector<8x2xf32>
    tpu.vector_store %arg6[%c0_13, %c0_14], %33 {strides = array<i32>} : memref<8x2xf32, #tpu.memory_space<vmem>>, vector<8x2xf32>,
    return
  }
  func.func @transform_0(%arg0: i32) -> (i32, i32) {
    %c0_i32 = arith.constant 0 : i32
    %c0_i32_0 = arith.constant 0 : i32
    return %c0_i32, %arg0 : i32, i32
  }
  func.func @transform_1(%arg0: i32) -> (i32, i32) {
    %c0_i32 = arith.constant 0 : i32
    %c0_i32_0 = arith.constant 0 : i32
    %c0_i32_1 = arith.constant 0 : i32
    return %c0_i32, %c0_i32_0 : i32, i32
  }
  func.func @transform_2(%arg0: i32) -> (i32, i32) {
    %c0_i32 = arith.constant 0 : i32
    %c0_i32_0 = arith.constant 0 : i32
    %c0_i32_1 = arith.constant 0 : i32
    return %c0_i32, %c0_i32_0 : i32, i32
  }
  func.func @transform_3(%arg0: i32) -> (i32, i32) {
    %c0_i32 = arith.constant 0 : i32
    %c0_i32_0 = arith.constant 0 : i32
    %c0_i32_1 = arith.constant 0 : i32
    return %c0_i32, %c0_i32_0 : i32, i32
  }
  func.func @transform_4(%arg0: i32) -> (i32, i32) {
    %c0_i32 = arith.constant 0 : i32
    %c0_i32_0 = arith.constant 0 : i32
    %c0_i32_1 = arith.constant 0 : i32
    return %c0_i32, %c0_i32_0 : i32, i32
  }
  func.func @transform_5(%arg0: i32) -> (i32, i32) {
    %c0_i32 = arith.constant 0 : i32
    %c0_i32_0 = arith.constant 0 : i32
    return %c0_i32, %arg0 : i32, i32
  }
}

</mosaic_0001>

<llo_original>
// kernel: tpu_custom_call.1
$region0: #{tpu_custom_call.1}
  #allocation0 [shape = 'u32[]', space=smem, size = 0x4, offset = 0x4, fixed_abs, tag = 'smem constant byte address 0x4 - core index']
  #allocation1 [shape = 'u32[72,128]{1,0:T(1,128)}', space=vmem, size = 0x9000, scoped, tag = 'internal scratch']
  %s0 = inlined_call_operand.vmem [shape: f32[4,2], index: 0, kind: input, shape index: {}]
  %s1 = inlined_call_operand.vmem [shape: f32[64,4], index: 1, kind: input, shape index: {}]
  %s2 = inlined_call_operand.vmem [shape: f32[64,1], index: 2, kind: input, shape index: {}]
  %s3 = inlined_call_operand.vmem [shape: f32[8,64], index: 3, kind: input, shape index: {}]
  %s4 = inlined_call_operand.vmem [shape: f32[8,1], index: 4, kind: input, shape index: {}]
  %s5 = inlined_call_operand.vmem [shape: f32[8,2], index: 5, kind: output, shape index: {}]
  %s6 = sld [smem:[#allocation0]]
  $region30: #{tpu_custom_call.1} parent=0
    _
  %s8 = ssub.s32 1, %s6
  %s9 = scalar_select 0, %s8, %s6
  // Predicated region
  $region2: #{tpu_custom_call.1} parent=0 // pred_check
    _
  $region3: #{tpu_custom_call.1} parent=0 // pred_check_branch
    %11 = sbr.rel (0) target = $region5
  $region4: #{tpu_custom_call.1} parent=0 // pred_region
    _
  $region5: #{tpu_custom_call.1} parent=0 // pred_fallthru
    _
  // Predicated region
  $region6: #{tpu_custom_call.1} parent=0 // pred_check
    _
  $region7: #{tpu_custom_call.1} parent=0 // pred_check_branch
    %13 = sbr.rel (0) target = $region9
  $region8: #{tpu_custom_call.1} parent=0 // pred_region
    _
  $region9: #{tpu_custom_call.1} parent=0 // pred_fallthru
    _
  // Predicated region
  $region10: #{tpu_custom_call.1} parent=0 // pred_check
    _
  $region11: #{tpu_custom_call.1} parent=0 // pred_check_branch
    %15 = sbr.rel (0) target = $region13
  $region12: #{tpu_custom_call.1} parent=0 // pred_region
    _
  $region13: #{tpu_custom_call.1} parent=0 // pred_fallthru
    _
  // Predicated region
  $region14: #{tpu_custom_call.1} parent=0 // pred_check
    _
  $region15: #{tpu_custom_call.1} parent=0 // pred_check_branch
    %17 = sbr.rel (0) target = $region17
  $region16: #{tpu_custom_call.1} parent=0 // pred_region
    _
  $region17: #{tpu_custom_call.1} parent=0 // pred_fallthru
    _
  // Predicated region
  $region18: #{tpu_custom_call.1} parent=0 // pred_check
    _
  $region19: #{tpu_custom_call.1} parent=0 // pred_check_branch
    %19 = sbr.rel (0) target = $region21
  $region20: #{tpu_custom_call.1} parent=0 // pred_region
    _
  $region21: #{tpu_custom_call.1} parent=0 // pred_fallthru
    _
  %v20 = vld [vmem:[%s0] sm:$0xf]
  %v21 = vld [vmem:[%s1] sm:$0xff]
  %v22 = vld [vmem:[%s1 + $0x8] sm:$0xff]
  %v23 = vld [vmem:[%s1 + $0x10] sm:$0xff]
  %v24 = vld [vmem:[%s1 + $0x18] sm:$0xff]
  %v25 = vld [vmem:[%s1 + $0x20] sm:$0xff]
  %v26 = vld [vmem:[%s1 + $0x28] sm:$0xff]
  %v27 = vld [vmem:[%s1 + $0x30] sm:$0xff]
  %v28 = vld [vmem:[%s1 + $0x38] sm:$0xff]
  %30 = vset.pattern.permute.xlu0 0
  %31 = vperm.xlu0 %30, %v21
  %v32 = vpop.permute.xlu0 %31
  %35 = vset.pattern.permute.xlu0 0
  %36 = vperm.xlu0 %35, %v22
  %v37 = vpop.permute.xlu0 %36
  %40 = vset.pattern.permute.xlu0 0
  %41 = vperm.xlu0 %40, %v23
  %v42 = vpop.permute.xlu0 %41
  %45 = vset.pattern.permute.xlu0 0
  %46 = vperm.xlu0 %45, %v24
  %v47 = vpop.permute.xlu0 %46
  %50 = vset.pattern.permute.xlu0 0
  %51 = vperm.xlu0 %50, %v25
  %v52 = vpop.permute.xlu0 %51
  %55 = vset.pattern.permute.xlu0 0
  %56 = vperm.xlu0 %55, %v26
  %v57 = vpop.permute.xlu0 %56
  %60 = vset.pattern.permute.xlu0 0
  %61 = vperm.xlu0 %60, %v27
  %v62 = vpop.permute.xlu0 %61
  %65 = vset.pattern.permute.xlu0 0
  %66 = vperm.xlu0 %65, %v28
  %v67 = vpop.permute.xlu0 %66
  %v69 = vperm.slane %v20, 0
  %v70 = vmul.f32 %v32, %v69
  %v71 = vmul.f32 %v37, %v69
  %v72 = vmul.f32 %v42, %v69
  %v73 = vmul.f32 %v47, %v69
  %v74 = vmul.f32 %v52, %v69
  %v75 = vmul.f32 %v57, %v69
  %v76 = vmul.f32 %v62, %v69
  %v77 = vmul.f32 %v67, %v69
  %v78 = vld [vmem:[%s2] sm:$0xff]
  %v79 = vld [vmem:[%s2 + $0x8] sm:$0xff]
  %v80 = vld [vmem:[%s2 + $0x10] sm:$0xff]
  %v81 = vld [vmem:[%s2 + $0x18] sm:$0xff]
  %v82 = vld [vmem:[%s2 + $0x20] sm:$0xff]
  %v83 = vld [vmem:[%s2 + $0x28] sm:$0xff]
  %v84 = vld [vmem:[%s2 + $0x30] sm:$0xff]
  %v85 = vld [vmem:[%s2 + $0x38] sm:$0xff]
  %87 = vset.pattern.permute.xlu0 0
  %88 = vperm.xlu0 %87, %v78
  %v89 = vpop.permute.xlu0 %88
  %92 = vset.pattern.permute.xlu0 0
  %93 = vperm.xlu0 %92, %v79
  %v94 = vpop.permute.xlu0 %93
  %97 = vset.pattern.permute.xlu0 0
  %98 = vperm.xlu0 %97, %v80
  %v99 = vpop.permute.xlu0 %98
  %102 = vset.pattern.permute.xlu0 0
  %103 = vperm.xlu0 %102, %v81
  %v104 = vpop.permute.xlu0 %103
  %107 = vset.pattern.permute.xlu0 0
  %108 = vperm.xlu0 %107, %v82
  %v109 = vpop.permute.xlu0 %108
  %112 = vset.pattern.permute.xlu0 0
  %113 = vperm.xlu0 %112, %v83
  %v114 = vpop.permute.xlu0 %113
  %117 = vset.pattern.permute.xlu0 0
  %118 = vperm.xlu0 %117, %v84
  %v119 = vpop.permute.xlu0 %118
  %122 = vset.pattern.permute.xlu0 0
  %123 = vperm.xlu0 %122, %v85
  %v124 = vpop.permute.xlu0 %123
  %v126 = vadd.f32 %v70, %v89
  %v127 = vadd.f32 %v71, %v94
  %v128 = vadd.f32 %v72, %v99
  %v129 = vadd.f32 %v73, %v104
  %v130 = vadd.f32 %v74, %v109
  %v131 = vadd.f32 %v75, %v114
  %v132 = vadd.f32 %v76, %v119
  %v133 = vadd.f32 %v77, %v124
  %134 = vset.pattern.permute.xlu0 1
  %135 = vperm.xlu0 %134, %v21
  %v136 = vpop.permute.xlu0 %135
  %138 = vset.pattern.permute.xlu0 1
  %139 = vperm.xlu0 %138, %v22
  %v140 = vpop.permute.xlu0 %139
  %142 = vset.pattern.permute.xlu0 1
  %143 = vperm.xlu0 %142, %v23
  %v144 = vpop.permute.xlu0 %143
  %146 = vset.pattern.permute.xlu0 1
  %147 = vperm.xlu0 %146, %v24
  %v148 = vpop.permute.xlu0 %147
  %150 = vset.pattern.permute.xlu0 1
  %151 = vperm.xlu0 %150, %v25
  %v152 = vpop.permute.xlu0 %151
  %154 = vset.pattern.permute.xlu0 1
  %155 = vperm.xlu0 %154, %v26
  %v156 = vpop.permute.xlu0 %155
  %158 = vset.pattern.permute.xlu0 1
  %159 = vperm.xlu0 %158, %v27
  %v160 = vpop.permute.xlu0 %159
  %162 = vset.pattern.permute.xlu0 1
  %163 = vperm.xlu0 %162, %v28
  %v164 = vpop.permute.xlu0 %163
  %v166 = vperm.slane %v20, 1
  %v167 = vmul.f32 %v136, %v166
  %v168 = vmul.f32 %v140, %v166
  %v169 = vmul.f32 %v144, %v166
  %v170 = vmul.f32 %v148, %v166
  %v171 = vmul.f32 %v152, %v166
  %v172 = vmul.f32 %v156, %v166
  %v173 = vmul.f32 %v160, %v166
  %v174 = vmul.f32 %v164, %v166
  %v175 = vadd.f32 %v126, %v167
  %v176 = vadd.f32 %v127, %v168
  %v177 = vadd.f32 %v128, %v169
  %v178 = vadd.f32 %v129, %v170
  %v179 = vadd.f32 %v130, %v171
  %v180 = vadd.f32 %v131, %v172
  %v181 = vadd.f32 %v132, %v173
  %v182 = vadd.f32 %v133, %v174
  %183 = vset.pattern.permute.xlu0 2
  %184 = vperm.xlu0 %183, %v21
  %v185 = vpop.permute.xlu0 %184
  %187 = vset.pattern.permute.xlu0 2
  %188 = vperm.xlu0 %187, %v22
  %v189 = vpop.permute.xlu0 %188
  %191 = vset.pattern.permute.xlu0 2
  %192 = vperm.xlu0 %191, %v23
  %v193 = vpop.permute.xlu0 %192
  %195 = vset.pattern.permute.xlu0 2
  %196 = vperm.xlu0 %195, %v24
  %v197 = vpop.permute.xlu0 %196
  %199 = vset.pattern.permute.xlu0 2
  %200 = vperm.xlu0 %199, %v25
  %v201 = vpop.permute.xlu0 %200
  %203 = vset.pattern.permute.xlu0 2
  %204 = vperm.xlu0 %203, %v26
  %v205 = vpop.permute.xlu0 %204
  %207 = vset.pattern.permute.xlu0 2
  %208 = vperm.xlu0 %207, %v27
  %v209 = vpop.permute.xlu0 %208
  %211 = vset.pattern.permute.xlu0 2
  %212 = vperm.xlu0 %211, %v28
  %v213 = vpop.permute.xlu0 %212
  %v215 = vperm.slane %v20, 2
  %v216 = vmul.f32 %v185, %v215
  %v217 = vmul.f32 %v189, %v215
  %v218 = vmul.f32 %v193, %v215
  %v219 = vmul.f32 %v197, %v215
  %v220 = vmul.f32 %v201, %v215
  %v221 = vmul.f32 %v205, %v215
  %v222 = vmul.f32 %v209, %v215
  %v223 = vmul.f32 %v213, %v215
  %v224 = vadd.f32 %v175, %v216
  %v225 = vadd.f32 %v176, %v217
  %v226 = vadd.f32 %v177, %v218
  %v227 = vadd.f32 %v178, %v219
  %v228 = vadd.f32 %v179, %v220
  %v229 = vadd.f32 %v180, %v221
  %v230 = vadd.f32 %v181, %v222
  %v231 = vadd.f32 %v182, %v223
  %232 = vset.pattern.permute.xlu0 3
  %233 = vperm.xlu0 %232, %v21
  %v234 = vpop.permute.xlu0 %233
  %236 = vset.pattern.permute.xlu0 3
  %237 = vperm.xlu0 %236, %v22
  %v238 = vpop.permute.xlu0 %237
  %240 = vset.pattern.permute.xlu0 3
  %241 = vperm.xlu0 %240, %v23
  %v242 = vpop.permute.xlu0 %241
  %244 = vset.pattern.permute.xlu0 3
  %245 = vperm.xlu0 %244, %v24
  %v246 = vpop.permute.xlu0 %245
  %248 = vset.pattern.permute.xlu0 3
  %249 = vperm.xlu0 %248, %v25
  %v250 = vpop.permute.xlu0 %249
  %252 = vset.pattern.permute.xlu0 3
  %253 = vperm.xlu0 %252, %v26
  %v254 = vpop.permute.xlu0 %253
  %256 = vset.pattern.permute.xlu0 3
  %257 = vperm.xlu0 %256, %v27
  %v258 = vpop.permute.xlu0 %257
  %260 = vset.pattern.permute.xlu0 3
  %261 = vperm.xlu0 %260, %v28
  %v262 = vpop.permute.xlu0 %261
  %v264 = vperm.slane %v20, 3
  %v265 = vmul.f32 %v234, %v264
  %v266 = vmul.f32 %v238, %v264
  %v267 = vmul.f32 %v242, %v264
  %v268 = vmul.f32 %v246, %v264
  %v269 = vmul.f32 %v250, %v264
  %v270 = vmul.f32 %v254, %v264
  %v271 = vmul.f32 %v258, %v264
  %v272 = vmul.f32 %v262, %v264
  %v273 = vadd.f32 %v224, %v265
  %v274 = vadd.f32 %v225, %v266
  %v275 = vadd.f32 %v226, %v267
  %v276 = vadd.f32 %v227, %v268
  %v277 = vadd.f32 %v228, %v269
  %v278 = vadd.f32 %v229, %v270
  %v279 = vadd.f32 %v230, %v271
  %v280 = vadd.f32 %v231, %v272
  %v281 = vmax.f32 %v273, 0.0
  %v282 = vmax.f32 %v274, 0.0
  %v283 = vmax.f32 %v275, 0.0
  %v284 = vmax.f32 %v276, 0.0
  %v285 = vmax.f32 %v277, 0.0
  %v286 = vmax.f32 %v278, 0.0
  %v287 = vmax.f32 %v279, 0.0
  %v288 = vmax.f32 %v280, 0.0
  %v289 = vld [vmem:[%s3] sm:$0xff]
  %v290 = vld [vmem:[%s4] sm:$0xff]
  %292 = vset.pattern.permute.xlu0 0
  %293 = vperm.xlu0 %292, %v290
  %v294 = vpop.permute.xlu0 %293
  %vm296 = vcmask 523264
  %v298 = vsel %vm296, %v289, 0
  %300 = vmatpush.msra.mxu0 0.0
  %301 = vmatpush.msra.mxu0 0.0
  %302 = vmatpush.msra.mxu0 0.0
  %303 = vmatpush.msra.mxu0 0.0
  %304 = vmatpush.msra.mxu0 0.0
  %305 = vmatpush.msra.mxu0 0.0
  %306 = vmatpush.msra.mxu0 0.0
  %307 = vmatpush.msra.mxu0 0.0
  %308 = vmatpush.msra.mxu0 %v288
  %309 = vmatpush.msra.mxu0 %v287
  %310 = vmatpush.msra.mxu0 %v286
  %311 = vmatpush.msra.mxu0 %v285
  %312 = vmatpush.msra.mxu0 %v284
  %313 = vmatpush.msra.mxu0 %v283
  %314 = vmatpush.msra.mxu0 %v282
  %315 = vmatpush.msra.mxu0 %v281
  %316 = vmatmul.f32.gmra.mxu0 %v298
  %v317 = vpop.f32.mrf.mxu0
  %v318 = vadd.f32 %v294, %v317
  %319 = vdwg.mxu0
  %vm320 = vcmask 15360
  %321 = vst.msk [vmem:[%s5] sm:$0xff] %vm320, %v318
  // Predicated region
  $region22: #{tpu_custom_call.1} parent=0 // pred_check
    _
  $region23: #{tpu_custom_call.1} parent=0 // pred_check_branch
    %323 = sbr.rel (0) target = $region25
  $region24: #{tpu_custom_call.1} parent=0 // pred_region
    _
  $region25: #{tpu_custom_call.1} parent=0 // pred_fallthru
    _
  // Predicated region
  $region26: #{tpu_custom_call.1} parent=0 // pred_check
    _
  $region27: #{tpu_custom_call.1} parent=0 // pred_check_branch
    %325 = sbr.rel (0) target = $region29
  $region28: #{tpu_custom_call.1} parent=0 // pred_region
    _
  $region29: #{tpu_custom_call.1} parent=0 // pred_fallthru
    _

</llo_original>
